<compile_context>
chip_gen: v6e
topology: v6e:2x2x1
jax: 0.10.0
libtpu: 0.0.40
codegen_flags: <defaults>
</compile_context>

<pallas_src>
import dataclasses
import functools
import inspect

import jax
import jax.numpy as jnp
from jax.experimental import pallas as pl
from jax.experimental.pallas import tpu as pltpu


def _round_up(x: int, m: int) -> int:
    return (x + m - 1) // m * m


def _cdiv(a: int, b: int) -> int:
    return (a + b - 1) // b


# --------------------------- chip detection --------------------------------
def _chip_info():
    """Best-effort chip generation + VMEM capacity (plan-time, Python only)."""
    kind = ""
    try:
        kind = jax.devices()[0].device_kind.lower()
    except Exception:
        pass
    is_v7 = "7" in kind
    is_v5e = ("v5 lite" in kind) or ("v5e" in kind) or ("v5litepod" in kind)
    vmem_capacity = None
    try:
        vmem_capacity = int(pltpu.get_tpu_info().vmem_capacity_bytes)
    except Exception:
        vmem_capacity = None
    if vmem_capacity is None:
        vmem_capacity = (64 << 20) if is_v7 else (128 << 20)
    return is_v5e, is_v7, vmem_capacity


# ------------------------------- planning ----------------------------------
@dataclasses.dataclass(frozen=True)
class FFNPlan:
    n_tokens: int
    d_model: int
    d_ff: int
    tm: int
    tf: int
    d_model_p: int
    d_ff_p: int
    n_tok_p: int
    g0: int
    g1: int
    matmul_dtype: object
    out_dtype: object
    use_acc_scratch: bool
    nbuf_weights: int
    vmem_limit: int


def make_ffn_plan(n_tokens, d_model, d_ff, *, out_dtype=jnp.float32,
                  matmul_dtype=jnp.bfloat16, tm=None, tf=None):
    """Chip-aware tile / padding / VMEM plan.  Pure Python; compute once."""
    is_v5e, is_v7, vmem_capacity = _chip_info()

    # v6e/v7x MXUs are 256 wide; 128-wide contractions waste half the array.
    mxu_align = 128 if is_v5e else 256
    # Leave compiler headroom: ~16 MiB on 128 MiB parts, ~10 MiB on v7x (64 MiB).
    reserve = (10 << 20) if is_v7 else (16 << 20)
    vmem_cap = max(vmem_capacity - reserve, 24 << 20)

    itm = jnp.dtype(matmul_dtype).itemsize
    iout = jnp.dtype(out_dtype).itemsize
    use_acc = jnp.dtype(out_dtype) != jnp.dtype(jnp.float32)
    nbuf_w = 3 if is_v5e else 2   # Buffered(3) hides exposed weight DMA on v5e

    d_model_p = _round_up(d_model, mxu_align)

    # Token tile: arithmetic intensity is ~tm FLOPs per weight byte, so big tm
    # flips the kernel MXU-bound (v6e needs ~650 FLOPs/B -> tm ~1024).
    if tm is None:
        tm = 512 if (is_v7 or is_v5e) else 1024
    tm = min(tm, _round_up(n_tokens, 8))
    tm = max(8, _round_up(tm, 8))

    # d_ff reduction tile (W1 columns / W2 rows streamed per step).
    if tf is None:
        tf = 256 if is_v7 else 512
    tf = max(128, min(tf, _round_up(d_ff, mxu_align)))
    tf = _round_up(tf, mxu_align)

    def est(tm_, tf_):
        e = 2 * tm_ * d_model_p * itm                   # x tile (double buffered)
        e += nbuf_w * d_model_p * tf_ * itm             # W1 slice
        e += nbuf_w * tf_ * d_model_p * itm             # W2 slice
        e += _round_up(d_ff, tf_) * 4                   # b1 (fully resident)
        e += 2 * d_model_p * 4                          # b2
        e += 2 * tm_ * d_model_p * iout                 # out tile
        if use_acc:
            e += tm_ * d_model_p * 4                    # f32 accumulator scratch
        e += tm_ * tf_ * (4 + itm)                      # h (f32) + narrow copy
        return e

    # Shrink tiles until they fit the per-chip VMEM budget.
    while est(tm, tf) > vmem_cap and (tm > 256 or tf > 256):
        if tm > 256:
            tm = max(256, _round_up(tm // 2, 8))
        else:
            tf = max(256, _round_up(tf // 2, mxu_align))

    # v7x: 2 TensorCores share HBM -> make the "parallel" token axis an even
    # number of tiles so both cores get balanced work.
    if is_v7 and n_tokens > tm:
        g0 = _cdiv(n_tokens, tm)
        if g0 % 2:
            g0 += 1
            tm = max(8, _round_up(_cdiv(n_tokens, g0), 8))

    n_tok_p = _round_up(n_tokens, tm)
    d_ff_p = _round_up(d_ff, tf)
    g0 = n_tok_p // tm
    g1 = d_ff_p // tf

    vmem_limit = int(min(max(est(tm, tf) + (8 << 20), 32 << 20), vmem_cap))

    return FFNPlan(n_tokens=n_tokens, d_model=d_model, d_ff=d_ff, tm=tm, tf=tf,
                   d_model_p=d_model_p, d_ff_p=d_ff_p, n_tok_p=n_tok_p,
                   g0=g0, g1=g1, matmul_dtype=jnp.dtype(matmul_dtype),
                   out_dtype=jnp.dtype(out_dtype), use_acc_scratch=use_acc,
                   nbuf_weights=nbuf_w, vmem_limit=vmem_limit)


def prepare_ffn_weights(w1, b1, w2, b2, plan: FFNPlan):
    """Pad + cast weights once.  Hoist this out of the per-call hot path."""
    dm, df = plan.d_model, plan.d_ff
    w1p = jnp.pad(w1, ((0, plan.d_model_p - dm), (0, plan.d_ff_p - df))
                  ).astype(plan.matmul_dtype)
    w2p = jnp.pad(w2, ((0, plan.d_ff_p - df), (0, plan.d_model_p - dm))
                  ).astype(plan.matmul_dtype)
    b1p = jnp.pad(b1, (0, plan.d_ff_p - df)).astype(jnp.float32
                  ).reshape(plan.g1, 1, plan.tf)
    b2p = jnp.pad(b2, (0, plan.d_model_p - dm)).astype(jnp.float32
                  ).reshape(1, plan.d_model_p)
    return w1p, b1p, w2p, b2p


# -------------------------------- kernel ------------------------------------
def _ffn_kernel(x_ref, w1_ref, b1_ref, w2_ref, b2_ref, o_ref, *scratch,
                use_acc_scratch):
    # x_ref:  (tm, d_model_p)       matmul dtype
    # w1_ref: (d_model_p, tf)       matmul dtype   (streamed over j)
    # b1_ref: (g1, 1, tf)           f32            (fully VMEM resident)
    # w2_ref: (tf, d_model_p)       matmul dtype   (streamed over j)
    # b2_ref: (1, d_model_p)        f32            (resident)
    # o_ref:  (tm, d_model_p)       out dtype      (resident across j)
    # scratch[0] (optional): (tm, d_model_p) f32 accumulator (narrow out dtype)
    j = pl.program_id(1)
    nj = pl.num_programs(1)

    # First GEMM (MXU, f32 accumulation); bias + ReLU in f32 on the VPU.
    h = jnp.dot(x_ref[...], w1_ref[...], preferred_element_type=jnp.float32)
    h = jnp.maximum(h + b1_ref[j], 0.0)
    # Dropout == identity (eval / inference semantics).

    # Second GEMM: this d_ff slice's contribution, accumulated in f32.
    contrib = jnp.dot(h.astype(w2_ref.dtype), w2_ref[...],
                      preferred_element_type=jnp.float32)

    if use_acc_scratch:
        acc_ref = scratch[0]

        @pl.when(j == 0)
        def _init():                       # fold zero-init into first step
            acc_ref[...] = contrib

        @pl.when(j != 0)
        def _accum():
            acc_ref[...] += contrib

        @pl.when(j == nj - 1)
        def _finalize():
            o_ref[...] = (acc_ref[...] + b2_ref[...]).astype(o_ref.dtype)
    else:
        # f32 output: accumulate directly into the resident output tile
        # (no redundant accumulator scratch).
        @pl.when(j == 0)
        def _init():
            o_ref[...] = contrib + b2_ref[...]

        @pl.when(j != 0)
        def _accum():
            o_ref[...] += contrib


def _ffn_pallas_call(plan: FFNPlan):
    tm, tf, d_model_p, g1 = plan.tm, plan.tf, plan.d_model_p, plan.g1

    # Optional deeper buffering for the streamed weight slices (v5e only),
    # guarded so it is inert where the API kwarg is unavailable.
    w_kwargs = {}
    if plan.nbuf_weights > 2:
        try:
            if hasattr(pl, "Buffered") and \
               "pipeline_mode" in inspect.signature(pl.BlockSpec).parameters:
                w_kwargs = dict(pipeline_mode=pl.Buffered(plan.nbuf_weights))
        except (TypeError, ValueError):
            w_kwargs = {}

    in_specs = [
        pl.BlockSpec((tm, d_model_p), lambda i, j: (i, 0)),              # x tile
        pl.BlockSpec((d_model_p, tf), lambda i, j: (0, j), **w_kwargs),  # W1 slice
        pl.BlockSpec((g1, 1, tf),     lambda i, j: (0, 0, 0)),           # b1 (resident)
        pl.BlockSpec((tf, d_model_p), lambda i, j: (j, 0), **w_kwargs),  # W2 slice
        pl.BlockSpec((1, d_model_p),  lambda i, j: (0, 0)),              # b2 (resident)
    ]
    out_spec = pl.BlockSpec((tm, d_model_p), lambda i, j: (i, 0))
    scratch = ([pltpu.VMEM((tm, d_model_p), jnp.float32)]
               if plan.use_acc_scratch else [])

    itm = jnp.dtype(plan.matmul_dtype).itemsize
    iout = jnp.dtype(plan.out_dtype).itemsize
    cost = pl.CostEstimate(
        flops=4 * plan.n_tok_p * plan.d_model_p * plan.d_ff_p,
        transcendentals=0,
        bytes_accessed=(
            plan.n_tok_p * plan.d_model_p * itm                        # x read once
            + 2 * plan.g0 * plan.d_model_p * plan.d_ff_p * itm         # W1+W2 re-streamed per token tile
            + plan.d_ff_p * 4 + plan.d_model_p * 4                     # biases
            + plan.n_tok_p * plan.d_model_p * iout))                   # output

    return pl.pallas_call(
        functools.partial(_ffn_kernel, use_acc_scratch=plan.use_acc_scratch),
        out_shape=jax.ShapeDtypeStruct((plan.n_tok_p, plan.d_model_p),
                                       plan.out_dtype),
        grid_spec=pltpu.PrefetchScalarGridSpec(
            num_scalar_prefetch=0,
            grid=(plan.g0, plan.g1),
            in_specs=in_specs,
            out_specs=out_spec,
            scratch_shapes=scratch),
        compiler_params=pltpu.CompilerParams(
            dimension_semantics=("parallel", "arbitrary"),
            vmem_limit_bytes=plan.vmem_limit),
        cost_estimate=cost,
    )


# ------------------------------- wrapper ------------------------------------
def feed_forward_block(x, w1, b1, w2, b2, *, tm=None, tf=None,
                       matmul_dtype=jnp.bfloat16, plan=None, prepared=None):
    """PyTorch FeedForwardBlock forward: linear_2(dropout(relu(linear_1(x)))).

    x: (batch, seq, d_model); w1: (d_model, d_ff); b1: (d_ff,);
    w2: (d_ff, d_model); b2: (d_model,).  Dropout is identity (eval mode).
    Pass matmul_dtype=jnp.float32 for bit-closer parity with f32 Linears.
    For inference, build `plan = make_ffn_plan(...)` and
    `prepared = prepare_ffn_weights(...)` once and pass them in so weight
    padding/casting leaves the hot path.
    """
    batch, seq, d_model = x.shape
    d_ff = w1.shape[1]
    n_tokens = batch * seq
    out_dtype = x.dtype

    if plan is None:
        plan = make_ffn_plan(n_tokens, d_model, d_ff, out_dtype=out_dtype,
                             matmul_dtype=matmul_dtype, tm=tm, tf=tf)
    if prepared is None:
        prepared = prepare_ffn_weights(w1, b1, w2, b2, plan)
    w1p, b1p, w2p, b2p = prepared

    x2d = jnp.pad(x.reshape(n_tokens, d_model),
                  ((0, plan.n_tok_p - n_tokens),
                   (0, plan.d_model_p - d_model))).astype(plan.matmul_dtype)

    out2d = _ffn_pallas_call(plan)(x2d, w1p, b1p, w2p, b2p)
    return out2d[:n_tokens, :d_model].reshape(batch, seq, d_model)


# --------------------------------- test --------------------------------------
if __name__ == "__main__":
    batch, seq, d_model, d_ff = 2, 8, 32, 64
    key = jax.random.PRNGKey(0)
    kx, k1, k2, k3, k4 = jax.random.split(key, 5)

    x = jax.random.normal(kx, (batch, seq, d_model), dtype=jnp.float32)

    # Deterministic parameter init mimicking nn.Linear (uniform +/- 1/sqrt(fan_in)).
    bound1 = 1.0 / (d_model ** 0.5)
    bound2 = 1.0 / (d_ff ** 0.5)
    w1 = jax.random.uniform(k1, (d_model, d_ff), jnp.float32, -bound1, bound1)
    b1 = jax.random.uniform(k2, (d_ff,), jnp.float32, -bound1, bound1)
    w2 = jax.random.uniform(k3, (d_ff, d_model), jnp.float32, -bound2, bound2)
    b2 = jax.random.uniform(k4, (d_model,), jnp.float32, -bound2, bound2)

    # Convenience path (plans + prepares weights internally).
    out = jax.block_until_ready(feed_forward_block(x, w1, b1, w2, b2))
    assert out.shape == (batch, seq, d_model)

    # Hoisted-weights (inference) path: plan + prepare once, reuse per call.
    plan = make_ffn_plan(batch * seq, d_model, d_ff, out_dtype=x.dtype)
    prepared = prepare_ffn_weights(w1, b1, w2, b2, plan)
    out_hoisted = jax.block_until_ready(
        feed_forward_block(x, w1, b1, w2, b2, plan=plan, prepared=prepared))
    assert jnp.allclose(out, out_hoisted, atol=1e-6, rtol=1e-6), \
        "prepared-weights path mismatch"

    # Reference with matching bf16 matmul operands / f32 accumulation.
    xb = x.reshape(-1, d_model).astype(jnp.bfloat16)
    h_ref = jnp.maximum(
        jnp.dot(xb, w1.astype(jnp.bfloat16),
                preferred_element_type=jnp.float32) + b1, 0.0)
    ref_bf16 = (jnp.dot(h_ref.astype(jnp.bfloat16), w2.astype(jnp.bfloat16),
                        preferred_element_type=jnp.float32)
                + b2).reshape(batch, seq, d_model)
    # Pure f32 reference (dropout = identity in eval mode), looser tolerance.
    ref_f32 = jnp.maximum(x @ w1 + b1, 0.0) @ w2 + b2

    assert jnp.allclose(out, ref_bf16, atol=1e-2, rtol=1e-2), \
        "mismatch vs bf16-matched reference"
    assert jnp.allclose(out, ref_f32, atol=5e-2, rtol=5e-2), \
        "mismatch vs f32 reference"

    print("KERNEL_OK")
</pallas_src>

<mosaic_0001>
module attributes {stable_mosaic.version = 11 : i64} {
  func.func @_ffn_kernel(%arg0: i32, %arg1: i32, %arg2: memref<16x256xbf16, #tpu.memory_space<vmem>>, %arg3: memref<256x256xbf16, #tpu.memory_space<vmem>>, %arg4: memref<1x1x256xf32, #tpu.memory_space<vmem>>, %arg5: memref<256x256xbf16, #tpu.memory_space<vmem>>, %arg6: memref<1x256xf32, #tpu.memory_space<vmem>>, %arg7: memref<16x256xf32, #tpu.memory_space<vmem>>) attributes {dimension_semantics = [#tpu.dimension_semantics<parallel>, #tpu.dimension_semantics<arbitrary>], iteration_bounds = array<i64: 1, 1>, scalar_prefetch = 0 : i64, scratch_operands = 0 : i64, tpu.core_type = #tpu.core_type<tc>, window_params = [{transform_indices = @transform_0, window_bounds = array<i64: 16, 256>}, {transform_indices = @transform_1, window_bounds = array<i64: 256, 256>}, {pipeline_mode = #tpu.pipeline_mode<synchronous>, transform_indices = @transform_2, window_bounds = array<i64: 1, 1, 256>}, {transform_indices = @transform_3, window_bounds = array<i64: 256, 256>}, {pipeline_mode = #tpu.pipeline_mode<synchronous>, transform_indices = @transform_4, window_bounds = array<i64: 1, 256>}, {transform_indices = @transform_5, window_bounds = array<i64: 16, 256>}]} {
    %c0 = arith.constant 0 : index
    %c0_0 = arith.constant 0 : index
    %0 = vector.load %arg2[%c0, %c0_0] : memref<16x256xbf16, #tpu.memory_space<vmem>>, vector<16x256xbf16>
    %c0_1 = arith.constant 0 : index
    %c0_2 = arith.constant 0 : index
    %1 = vector.load %arg3[%c0_1, %c0_2] : memref<256x256xbf16, #tpu.memory_space<vmem>>, vector<256x256xbf16>
    %cst = arith.constant dense<0.000000e+00> : vector<16x256xf32>
    %2 = tpu.matmul %0, %1, %cst {dimension_numbers = #tpu.dot_dimension_numbers<[1], [0], [0], [1], [0, 0, 1, 1], [], []>} : vector<16x256xbf16>, vector<256x256xbf16>, vector<16x256xf32> -> vector<16x256xf32>
    %3 = arith.index_cast %arg1 : i32 to index
    %c0_3 = arith.constant 0 : index
    %c0_4 = arith.constant 0 : index
    %4 = vector.load %arg4[%3, %c0_3, %c0_4] : memref<1x1x256xf32, #tpu.memory_space<vmem>>, vector<1x1x256xf32>
    %5 = vector.shape_cast %4 : vector<1x1x256xf32> to vector<1x256xf32>
    %6 = vector.broadcast %5 : vector<1x256xf32> to vector<16x256xf32>
    %7 = arith.addf %2, %6 : vector<16x256xf32>
    %cst_5 = arith.constant 0.000000e+00 : f32
    %8 = vector.broadcast %cst_5 : f32 to vector<16x256xf32>
    %9 = arith.maximumf %7, %8 : vector<16x256xf32>
    %10 = arith.truncf %9 : vector<16x256xf32> to vector<16x256xbf16>
    %c0_6 = arith.constant 0 : index
    %c0_7 = arith.constant 0 : index
    %11 = vector.load %arg5[%c0_6, %c0_7] : memref<256x256xbf16, #tpu.memory_space<vmem>>, vector<256x256xbf16>
    %cst_8 = arith.constant dense<0.000000e+00> : vector<16x256xf32>
    %12 = tpu.matmul %10, %11, %cst_8 {dimension_numbers = #tpu.dot_dimension_numbers<[1], [0], [0], [1], [0, 0, 1, 1], [], []>} : vector<16x256xbf16>, vector<256x256xbf16>, vector<16x256xf32> -> vector<16x256xf32>
    %c0_i32 = arith.constant 0 : i32
    %13 = arith.cmpi eq, %arg1, %c0_i32 : i32
    %14 = arith.extui %13 : i1 to i32
    %c0_i32_9 = arith.constant 0 : i32
    %15 = arith.cmpi ne, %14, %c0_i32_9 : i32
    scf.if %15 {
      %c0_12 = arith.constant 0 : index
      %c0_13 = arith.constant 0 : index
      %19 = vector.load %arg6[%c0_12, %c0_13] : memref<1x256xf32, #tpu.memory_space<vmem>>, vector<1x256xf32>
      %20 = vector.broadcast %19 : vector<1x256xf32> to vector<16x256xf32>
      %21 = arith.addf %12, %20 : vector<16x256xf32>
      %c0_14 = arith.constant 0 : index
      %c0_15 = arith.constant 0 : index
      %22 = vector.load %arg7[%c0_14, %c0_15] : memref<16x256xf32, #tpu.memory_space<vmem>>, vector<16x256xf32>
      tpu.vector_store %arg7[%c0_14, %c0_15], %21 {strides = array<i32>} : memref<16x256xf32, #tpu.memory_space<vmem>>, vector<16x256xf32>,
    } else {
    }
    %c0_i32_10 = arith.constant 0 : i32
    %16 = arith.cmpi ne, %arg1, %c0_i32_10 : i32
    %17 = arith.extui %16 : i1 to i32
    %c0_i32_11 = arith.constant 0 : i32
    %18 = arith.cmpi ne, %17, %c0_i32_11 : i32
    scf.if %18 {
      %c0_12 = arith.constant 0 : index
      %c0_13 = arith.constant 0 : index
      %19 = vector.load %arg7[%c0_12, %c0_13] : memref<16x256xf32, #tpu.memory_space<vmem>>, vector<16x256xf32>
      %20 = arith.addf %19, %12 : vector<16x256xf32>
      %c0_14 = arith.constant 0 : index
      %c0_15 = arith.constant 0 : index
      %21 = vector.load %arg7[%c0_14, %c0_15] : memref<16x256xf32, #tpu.memory_space<vmem>>, vector<16x256xf32>
      tpu.vector_store %arg7[%c0_14, %c0_15], %20 {strides = array<i32>} : memref<16x256xf32, #tpu.memory_space<vmem>>, vector<16x256xf32>,
    } else {
    }
    return
  }
  func.func @transform_0(%arg0: i32, %arg1: i32) -> (i32, i32) {
    %c0_i32 = arith.constant 0 : i32
    %c0_i32_0 = arith.constant 0 : i32
    return %arg0, %c0_i32 : i32, i32
  }
  func.func @transform_1(%arg0: i32, %arg1: i32) -> (i32, i32) {
    %c0_i32 = arith.constant 0 : i32
    %c0_i32_0 = arith.constant 0 : i32
    return %c0_i32, %arg1 : i32, i32
  }
  func.func @transform_2(%arg0: i32, %arg1: i32) -> (i32, i32, i32) {
    %c0_i32 = arith.constant 0 : i32
    %c0_i32_0 = arith.constant 0 : i32
    %c0_i32_1 = arith.constant 0 : i32
    %c0_i32_2 = arith.constant 0 : i32
    return %c0_i32, %c0_i32_0, %c0_i32_1 : i32, i32, i32
  }
  func.func @transform_3(%arg0: i32, %arg1: i32) -> (i32, i32) {
    %c0_i32 = arith.constant 0 : i32
    %c0_i32_0 = arith.constant 0 : i32
    return %arg1, %c0_i32 : i32, i32
  }
  func.func @transform_4(%arg0: i32, %arg1: i32) -> (i32, i32) {
    %c0_i32 = arith.constant 0 : i32
    %c0_i32_0 = arith.constant 0 : i32
    %c0_i32_1 = arith.constant 0 : i32
    return %c0_i32, %c0_i32_0 : i32, i32
  }
  func.func @transform_5(%arg0: i32, %arg1: i32) -> (i32, i32) {
    %c0_i32 = arith.constant 0 : i32
    %c0_i32_0 = arith.constant 0 : i32
    return %arg0, %c0_i32 : i32, i32
  }
}

</mosaic_0001>

<llo_original>
// kernel: tpu_custom_call.1
$region0: #{tpu_custom_call.1}
  #allocation0 [shape = 'u32[]', space=smem, size = 0x4, offset = 0x4, fixed_abs, tag = 'smem constant byte address 0x4 - core index']
  #allocation1 [shape = 'u32[144,128]{1,0:T(1,128)}', space=vmem, size = 0x12000, scoped, tag = 'internal scratch']
  %s0 = inlined_call_operand.hbm [shape: bf16[16,256], index: 0, kind: input, shape index: {}]
  %s1 = inlined_call_operand.hbm [shape: bf16[256,256], index: 1, kind: input, shape index: {}]
  %s2 = inlined_call_operand.vmem [shape: f32[1,1,256], index: 2, kind: input, shape index: {}]
  %s3 = inlined_call_operand.hbm [shape: bf16[256,256], index: 3, kind: input, shape index: {}]
  %s4 = inlined_call_operand.vmem [shape: f32[1,256], index: 4, kind: input, shape index: {}]
  %s5 = inlined_call_operand.hbm [shape: f32[16,256], index: 5, kind: output, shape index: {}]
  %s6 = sld [smem:[#allocation0]]
  $region50: #{tpu_custom_call.1} parent=0
    _
  %s8 = ssub.s32 1, %s6
  %s9 = scalar_select 0, %s8, %s6
  $region1: #{tpu_custom_call.1} parent=0
    #allocation2 [shape = 'u8[8192]{0}', space=vmem, size = 0x2000, scoped, tag = 'input window, operand 0, single buffered']
    #allocation3 [shape = 's32[1]{0}', space=sflag, size = 0x4, scoped, tag = 'scoped memory for tpu_custom_call.1']
    #allocation4 [shape = 's32[1]{0}', space=sflag, size = 0x4, scoped, tag = 'scoped memory for tpu_custom_call.1']
    #allocation5 [shape = 'u8[131072]{0}', space=vmem, size = 0x20000, scoped, tag = 'input window, operand 1, single buffered']
    #allocation6 [shape = 's32[1]{0}', space=sflag, size = 0x4, scoped, tag = 'scoped memory for tpu_custom_call.1']
    #allocation7 [shape = 'u8[131072]{0}', space=vmem, size = 0x20000, scoped, tag = 'input window, operand 3, single buffered']
    #allocation8 [shape = 'u8[16384]{0}', space=vmem, size = 0x4000, scoped, tag = 'output window, operand 0, single buffered']
    %10 = vsyncpa [#allocation3], 0
    %11 = vsyncpa [#allocation6], 0
    %12 = vsyncpa [#allocation4], 0
    // Predicated region
    $region2: #{tpu_custom_call.1} parent=1 // pred_check
      _
    $region3: #{tpu_custom_call.1} parent=1 // pred_check_branch
      %14 = sbr.rel (0) target = $region5
    $region4: #{tpu_custom_call.1} parent=1 // pred_region
      %s16 = ssub.s32 256, 256
      %17 = vsyncadd [#allocation3], %s16
      %s18 = sshll.u32 [#allocation2], 4
      %s19 = int_to_ptr.vmem [resolvable:$true] %s18
      %24 = dma.hbm_to_vmem [thread:$0]  %s0, 256, %s19, [#allocation3], 128, 128, 8
    $region5: #{tpu_custom_call.1} parent=1 // pred_fallthru
      _
    // Predicated region
    $region6: #{tpu_custom_call.1} parent=1 // pred_check
      _
    $region7: #{tpu_custom_call.1} parent=1 // pred_check_branch
      %26 = sbr.rel (0) target = $region9
    $region8: #{tpu_custom_call.1} parent=1 // pred_region
      %s28 = ssub.s32 4096, 4096
      %29 = vsyncadd [#allocation6], %s28
      %s30 = sshll.u32 [#allocation5], 4
      %s31 = int_to_ptr.vmem [resolvable:$true] %s30
      %36 = dma.hbm_to_vmem [thread:$0]  %s1, 4096, %s31, [#allocation6], 128, 128, 8
    $region9: #{tpu_custom_call.1} parent=1 // pred_fallthru
      _
    // Predicated region
    $region10: #{tpu_custom_call.1} parent=1 // pred_check
      _
    $region11: #{tpu_custom_call.1} parent=1 // pred_check_branch
      %38 = sbr.rel (0) target = $region13
    $region12: #{tpu_custom_call.1} parent=1 // pred_region
      _
    $region13: #{tpu_custom_call.1} parent=1 // pred_fallthru
      _
    // Predicated region
    $region14: #{tpu_custom_call.1} parent=1 // pred_check
      _
    $region15: #{tpu_custom_call.1} parent=1 // pred_check_branch
      %40 = sbr.rel (0) target = $region17
    $region16: #{tpu_custom_call.1} parent=1 // pred_region
      %s42 = ssub.s32 4096, 4096
      %43 = vsyncadd [#allocation6], %s42
      %s44 = sshll.u32 [#allocation7], 4
      %s45 = int_to_ptr.vmem [resolvable:$true] %s44
      %50 = dma.hbm_to_vmem [thread:$0]  %s3, 4096, %s45, [#allocation6], 128, 128, 8
    $region17: #{tpu_custom_call.1} parent=1 // pred_fallthru
      _
    // Predicated region
    $region18: #{tpu_custom_call.1} parent=1 // pred_check
      _
    $region19: #{tpu_custom_call.1} parent=1 // pred_check_branch
      %52 = sbr.rel (0) target = $region21
    $region20: #{tpu_custom_call.1} parent=1 // pred_region
      _
    $region21: #{tpu_custom_call.1} parent=1 // pred_fallthru
      _
    // Predicated region
    $region22: #{tpu_custom_call.1} parent=1 // pred_check
      _
    $region23: #{tpu_custom_call.1} parent=1 // pred_check_branch
      %54 = sbr.rel (0) target = $region25
    $region24: #{tpu_custom_call.1} parent=1 // pred_region
      %55 = dma.done [#allocation3], 256
    $region25: #{tpu_custom_call.1} parent=1 // pred_fallthru
      _
    // Predicated region
    $region26: #{tpu_custom_call.1} parent=1 // pred_check
      _
    $region27: #{tpu_custom_call.1} parent=1 // pred_check_branch
      %57 = sbr.rel (0) target = $region29
    $region28: #{tpu_custom_call.1} parent=1 // pred_region
      %58 = dma.done [#allocation6], 4096
    $region29: #{tpu_custom_call.1} parent=1 // pred_fallthru
      _
    // Predicated region
    $region30: #{tpu_custom_call.1} parent=1 // pred_check
      _
    $region31: #{tpu_custom_call.1} parent=1 // pred_check_branch
      %60 = sbr.rel (0) target = $region33
    $region32: #{tpu_custom_call.1} parent=1 // pred_region
      %61 = dma.done [#allocation6], 4096
    $region33: #{tpu_custom_call.1} parent=1 // pred_fallthru
      _
    %v62 = vld [vmem:[#allocation2] sm:$0xff]
    %v63 = vld [vmem:[#allocation2 + $0x8] sm:$0xff]
    %v64 = vld [vmem:[#allocation5] sm:$0xff]
    %v65 = vld [vmem:[#allocation5 + $0x8] sm:$0xff]
    %v66 = vld [vmem:[#allocation5 + $0x10] sm:$0xff]
    %v67 = vld [vmem:[#allocation5 + $0x18] sm:$0xff]
    %v68 = vld [vmem:[#allocation5 + $0x20] sm:$0xff]
    %v69 = vld [vmem:[#allocation5 + $0x28] sm:$0xff]
    %v70 = vld [vmem:[#allocation5 + $0x30] sm:$0xff]
    %v71 = vld [vmem:[#allocation5 + $0x38] sm:$0xff]
    %v72 = vld [vmem:[#allocation5 + $0x40] sm:$0xff]
    %v73 = vld [vmem:[#allocation5 + $0x48] sm:$0xff]
    %v74 = vld [vmem:[#allocation5 + $0x50] sm:$0xff]
    %v75 = vld [vmem:[#allocation5 + $0x58] sm:$0xff]
    %v76 = vld [vmem:[#allocation5 + $0x60] sm:$0xff]
    %v77 = vld [vmem:[#allocation5 + $0x68] sm:$0xff]
    %v78 = vld [vmem:[#allocation5 + $0x70] sm:$0xff]
    %v79 = vld [vmem:[#allocation5 + $0x78] sm:$0xff]
    %v80 = vld [vmem:[#allocation5 + $0x80] sm:$0xff]
    %v81 = vld [vmem:[#allocation5 + $0x88] sm:$0xff]
    %v82 = vld [vmem:[#allocation5 + $0x90] sm:$0xff]
    %v83 = vld [vmem:[#allocation5 + $0x98] sm:$0xff]
    %v84 = vld [vmem:[#allocation5 + $0xa0] sm:$0xff]
    %v85 = vld [vmem:[#allocation5 + $0xa8] sm:$0xff]
    %v86 = vld [vmem:[#allocation5 + $0xb0] sm:$0xff]
    %v87 = vld [vmem:[#allocation5 + $0xb8] sm:$0xff]
    %v88 = vld [vmem:[#allocation5 + $0xc0] sm:$0xff]
    %v89 = vld [vmem:[#allocation5 + $0xc8] sm:$0xff]
    %v90 = vld [vmem:[#allocation5 + $0xd0] sm:$0xff]
    %v91 = vld [vmem:[#allocation5 + $0xd8] sm:$0xff]
    %v92 = vld [vmem:[#allocation5 + $0xe0] sm:$0xff]
    %v93 = vld [vmem:[#allocation5 + $0xe8] sm:$0xff]
    %v94 = vld [vmem:[#allocation5 + $0xf0] sm:$0xff]
    %v95 = vld [vmem:[#allocation5 + $0xf8] sm:$0xff]
    %s96 = smul.u32 0, 2
    %s97 = scalar_lea.vmem %s2, %s96
    %v98 = vld [vmem:[%s97] sm:$0x3]
    %v100 = vlaneseq
    %v101 = vshrl.u32 %v100, 7
    %v102 = vsub.s32 0, %v101
    %v103 = vrot.slane %v98, %v102
    %v104 = vlaneseq
    %v105 = vshrl.u32 %v104, 7
    %v106 = vsub.s32 1, %v105
    %v107 = vrot.slane %v98, %v106
    %v112 = vunpack.c.l.b16 %v62
    %v113 = vunpack.c.h.b16 %v62
    %v114 = vunpack.c.l.b16 %v63
    %v115 = vunpack.c.h.b16 %v63
    %v116 = vpack.c.b16 %v114, %v112
    %v117 = vpack.c.b16 %v115, %v113
    %v152 = vunpack.c.l.b16 %v64
    %v153 = vunpack.c.h.b16 %v64
    %v154 = vunpack.c.l.b16 %v65
    %v155 = vunpack.c.h.b16 %v65
    %v156 = vunpack.c.l.b16 %v66
    %v157 = vunpack.c.h.b16 %v66
    %v158 = vunpack.c.l.b16 %v67
    %v159 = vunpack.c.h.b16 %v67
    %v160 = vunpack.c.l.b16 %v68
    %v161 = vunpack.c.h.b16 %v68
    %v162 = vunpack.c.l.b16 %v69
    %v163 = vunpack.c.h.b16 %v69
    %v164 = vunpack.c.l.b16 %v70
    %v165 = vunpack.c.h.b16 %v70
    %v166 = vunpack.c.l.b16 %v71
    %v167 = vunpack.c.h.b16 %v71
    %v168 = vunpack.c.l.b16 %v72
    %v169 = vunpack.c.h.b16 %v72
    %v170 = vunpack.c.l.b16 %v73
    %v171 = vunpack.c.h.b16 %v73
    %v172 = vunpack.c.l.b16 %v74
    %v173 = vunpack.c.h.b16 %v74
    %v174 = vunpack.c.l.b16 %v75
    %v175 = vunpack.c.h.b16 %v75
    %v176 = vunpack.c.l.b16 %v76
    %v177 = vunpack.c.h.b16 %v76
    %v178 = vunpack.c.l.b16 %v77
    %v179 = vunpack.c.h.b16 %v77
    %v180 = vunpack.c.l.b16 %v78
    %v181 = vunpack.c.h.b16 %v78
    %v182 = vunpack.c.l.b16 %v79
    %v183 = vunpack.c.h.b16 %v79
    %v184 = vunpack.c.l.b16 %v80
    %v185 = vunpack.c.h.b16 %v80
    %v186 = vunpack.c.l.b16 %v81
    %v187 = vunpack.c.h.b16 %v81
    %v188 = vunpack.c.l.b16 %v82
    %v189 = vunpack.c.h.b16 %v82
    %v190 = vunpack.c.l.b16 %v83
    %v191 = vunpack.c.h.b16 %v83
    %v192 = vunpack.c.l.b16 %v84
    %v193 = vunpack.c.h.b16 %v84
    %v194 = vunpack.c.l.b16 %v85
    %v195 = vunpack.c.h.b16 %v85
    %v196 = vunpack.c.l.b16 %v86
    %v197 = vunpack.c.h.b16 %v86
    %v198 = vunpack.c.l.b16 %v87
    %v199 = vunpack.c.h.b16 %v87
    %v200 = vunpack.c.l.b16 %v88
    %v201 = vunpack.c.h.b16 %v88
    %v202 = vunpack.c.l.b16 %v89
    %v203 = vunpack.c.h.b16 %v89
    %v204 = vunpack.c.l.b16 %v90
    %v205 = vunpack.c.h.b16 %v90
    %v206 = vunpack.c.l.b16 %v91
    %v207 = vunpack.c.h.b16 %v91
    %v208 = vunpack.c.l.b16 %v92
    %v209 = vunpack.c.h.b16 %v92
    %v210 = vunpack.c.l.b16 %v93
    %v211 = vunpack.c.h.b16 %v93
    %v212 = vunpack.c.l.b16 %v94
    %v213 = vunpack.c.h.b16 %v94
    %v214 = vunpack.c.l.b16 %v95
    %v215 = vunpack.c.h.b16 %v95
    %v216 = vpack.c.b16 %v154, %v152
    %v217 = vpack.c.b16 %v155, %v153
    %v218 = vpack.c.b16 %v158, %v156
    %v219 = vpack.c.b16 %v159, %v157
    %v220 = vpack.c.b16 %v162, %v160
    %v221 = vpack.c.b16 %v163, %v161
    %v222 = vpack.c.b16 %v166, %v164
    %v223 = vpack.c.b16 %v167, %v165
    %v224 = vpack.c.b16 %v170, %v168
    %v225 = vpack.c.b16 %v171, %v169
    %v226 = vpack.c.b16 %v174, %v172
    %v227 = vpack.c.b16 %v175, %v173
    %v228 = vpack.c.b16 %v178, %v176
    %v229 = vpack.c.b16 %v179, %v177
    %v230 = vpack.c.b16 %v182, %v180
    %v231 = vpack.c.b16 %v183, %v181
    %v232 = vpack.c.b16 %v186, %v184
    %v233 = vpack.c.b16 %v187, %v185
    %v234 = vpack.c.b16 %v190, %v188
    %v235 = vpack.c.b16 %v191, %v189
    %v236 = vpack.c.b16 %v194, %v192
    %v237 = vpack.c.b16 %v195, %v193
    %v238 = vpack.c.b16 %v198, %v196
    %v239 = vpack.c.b16 %v199, %v197
    %v240 = vpack.c.b16 %v202, %v200
    %v241 = vpack.c.b16 %v203, %v201
    %v242 = vpack.c.b16 %v206, %v204
    %v243 = vpack.c.b16 %v207, %v205
    %v244 = vpack.c.b16 %v210, %v208
    %v245 = vpack.c.b16 %v211, %v209
    %v246 = vpack.c.b16 %v214, %v212
    %v247 = vpack.c.b16 %v215, %v213
    %280 = vmatprep.subr.bf16.mxu0 %v231
    %281 = vmatpush1.bf16.msra.mxu0 %v230
    %282 = vmatprep.subr.bf16.mxu0 %v229
    %283 = vmatpush1.bf16.msra.mxu0 %v228
    %284 = vmatprep.subr.bf16.mxu0 %v227
    %285 = vmatpush1.bf16.msra.mxu0 %v226
    %286 = vmatprep.subr.bf16.mxu0 %v225
    %287 = vmatpush1.bf16.msra.mxu0 %v224
    %288 = vmatprep.subr.bf16.mxu0 %v223
    %289 = vmatpush1.bf16.msra.mxu0 %v222
    %290 = vmatprep.subr.bf16.mxu0 %v221
    %291 = vmatpush1.bf16.msra.mxu0 %v220
    %292 = vmatprep.subr.bf16.mxu0 %v219
    %293 = vmatpush1.bf16.msra.mxu0 %v218
    %294 = vmatprep.subr.bf16.mxu0 %v217
    %295 = vmatpush1.bf16.msra.mxu0 %v216
    %296 = vmatprep.subr.bf16.mxu0 %v247
    %297 = vmatpush2.bf16.msra.mxu0 %v246
    %298 = vmatprep.subr.bf16.mxu0 %v245
    %299 = vmatpush2.bf16.msra.mxu0 %v244
    %300 = vmatprep.subr.bf16.mxu0 %v243
    %301 = vmatpush2.bf16.msra.mxu0 %v242
    %302 = vmatprep.subr.bf16.mxu0 %v241
    %303 = vmatpush2.bf16.msra.mxu0 %v240
    %304 = vmatprep.subr.bf16.mxu0 %v239
    %305 = vmatpush2.bf16.msra.mxu0 %v238
    %306 = vmatprep.subr.bf16.mxu0 %v237
    %307 = vmatpush2.bf16.msra.mxu0 %v236
    %308 = vmatprep.subr.bf16.mxu0 %v235
    %309 = vmatpush2.bf16.msra.mxu0 %v234
    %310 = vmatprep.subr.bf16.mxu0 %v233
    %311 = vmatpush2.bf16.msra.mxu0 %v232
    %312 = vmatprep.mubr.bf16.mxu0 %v117
    %313 = vmatmul.mubr.bf16.gmra.mxu0 %v116
    %v314 = vpop.f32.mrf.mxu0
    %v315 = vadd.f32 %v103, %v314
    %v316 = vpop.f32.mrf.mxu0
    %v317 = vadd.f32 %v107, %v316
    %v318 = vpop.f32.mrf.mxu0
    %v319 = vadd.f32 %v103, %v318
    %v320 = vpop.f32.mrf.mxu0
    %v321 = vadd.f32 %v107, %v320
    %322 = vdwg.mxu0
    %v323 = vmax.f32 %v315, 0.0
    %v324 = vmax.f32 %v317, 0.0
    %v325 = vmax.f32 %v319, 0.0
    %v326 = vmax.f32 %v321, 0.0
    %v327 = vpack.c.bf16 %v325, %v323
    %v328 = vpack.c.bf16 %v326, %v324
    %v329 = vld [vmem:[#allocation7] sm:$0xff]
    %v330 = vld [vmem:[#allocation7 + $0x8] sm:$0xff]
    %v331 = vld [vmem:[#allocation7 + $0x10] sm:$0xff]
    %v332 = vld [vmem:[#allocation7 + $0x18] sm:$0xff]
    %v333 = vld [vmem:[#allocation7 + $0x20] sm:$0xff]
    %v334 = vld [vmem:[#allocation7 + $0x28] sm:$0xff]
    %v335 = vld [vmem:[#allocation7 + $0x30] sm:$0xff]
    %v336 = vld [vmem:[#allocation7 + $0x38] sm:$0xff]
    %v337 = vld [vmem:[#allocation7 + $0x40] sm:$0xff]
    %v338 = vld [vmem:[#allocation7 + $0x48] sm:$0xff]
    %v339 = vld [vmem:[#allocation7 + $0x50] sm:$0xff]
    %v340 = vld [vmem:[#allocation7 + $0x58] sm:$0xff]
    %v341 = vld [vmem:[#allocation7 + $0x60] sm:$0xff]
    %v342 = vld [vmem:[#allocation7 + $0x68] sm:$0xff]
    %v343 = vld [vmem:[#allocation7 + $0x70] sm:$0xff]
    %v344 = vld [vmem:[#allocation7 + $0x78] sm:$0xff]
    %v345 = vld [vmem:[#allocation7 + $0x80] sm:$0xff]
    %v346 = vld [vmem:[#allocation7 + $0x88] sm:$0xff]
    %v347 = vld [vmem:[#allocation7 + $0x90] sm:$0xff]
    %v348 = vld [vmem:[#allocation7 + $0x98] sm:$0xff]
    %v349 = vld [vmem:[#allocation7 + $0xa0] sm:$0xff]
    %v350 = vld [vmem:[#allocation7 + $0xa8] sm:$0xff]
    %v351 = vld [vmem:[#allocation7 + $0xb0] sm:$0xff]
    %v352 = vld [vmem:[#allocation7 + $0xb8] sm:$0xff]
    %v353 = vld [vmem:[#allocation7 + $0xc0] sm:$0xff]
    %v354 = vld [vmem:[#allocation7 + $0xc8] sm:$0xff]
    %v355 = vld [vmem:[#allocation7 + $0xd0] sm:$0xff]
    %v356 = vld [vmem:[#allocation7 + $0xd8] sm:$0xff]
    %v357 = vld [vmem:[#allocation7 + $0xe0] sm:$0xff]
    %v358 = vld [vmem:[#allocation7 + $0xe8] sm:$0xff]
    %v359 = vld [vmem:[#allocation7 + $0xf0] sm:$0xff]
    %v360 = vld [vmem:[#allocation7 + $0xf8] sm:$0xff]
    %v393 = vunpack.c.l.b16 %v329
    %v394 = vunpack.c.h.b16 %v329
    %v395 = vunpack.c.l.b16 %v330
    %v396 = vunpack.c.h.b16 %v330
    %v397 = vunpack.c.l.b16 %v331
    %v398 = vunpack.c.h.b16 %v331
    %v399 = vunpack.c.l.b16 %v332
    %v400 = vunpack.c.h.b16 %v332
    %v401 = vunpack.c.l.b16 %v333
    %v402 = vunpack.c.h.b16 %v333
    %v403 = vunpack.c.l.b16 %v334
    %v404 = vunpack.c.h.b16 %v334
    %v405 = vunpack.c.l.b16 %v335
    %v406 = vunpack.c.h.b16 %v335
    %v407 = vunpack.c.l.b16 %v336
    %v408 = vunpack.c.h.b16 %v336
    %v409 = vunpack.c.l.b16 %v337
    %v410 = vunpack.c.h.b16 %v337
    %v411 = vunpack.c.l.b16 %v338
    %v412 = vunpack.c.h.b16 %v338
    %v413 = vunpack.c.l.b16 %v339
    %v414 = vunpack.c.h.b16 %v339
    %v415 = vunpack.c.l.b16 %v340
    %v416 = vunpack.c.h.b16 %v340
    %v417 = vunpack.c.l.b16 %v341
    %v418 = vunpack.c.h.b16 %v341
    %v419 = vunpack.c.l.b16 %v342
    %v420 = vunpack.c.h.b16 %v342
    %v421 = vunpack.c.l.b16 %v343
    %v422 = vunpack.c.h.b16 %v343
    %v423 = vunpack.c.l.b16 %v344
    %v424 = vunpack.c.h.b16 %v344
    %v425 = vunpack.c.l.b16 %v345
    %v426 = vunpack.c.h.b16 %v345
    %v427 = vunpack.c.l.b16 %v346
    %v428 = vunpack.c.h.b16 %v346
    %v429 = vunpack.c.l.b16 %v347
    %v430 = vunpack.c.h.b16 %v347
    %v431 = vunpack.c.l.b16 %v348
    %v432 = vunpack.c.h.b16 %v348
    %v433 = vunpack.c.l.b16 %v349
    %v434 = vunpack.c.h.b16 %v349
    %v435 = vunpack.c.l.b16 %v350
    %v436 = vunpack.c.h.b16 %v350
    %v437 = vunpack.c.l.b16 %v351
    %v438 = vunpack.c.h.b16 %v351
    %v439 = vunpack.c.l.b16 %v352
    %v440 = vunpack.c.h.b16 %v352
    %v441 = vunpack.c.l.b16 %v353
    %v442 = vunpack.c.h.b16 %v353
    %v443 = vunpack.c.l.b16 %v354
    %v444 = vunpack.c.h.b16 %v354
    %v445 = vunpack.c.l.b16 %v355
    %v446 = vunpack.c.h.b16 %v355
    %v447 = vunpack.c.l.b16 %v356
    %v448 = vunpack.c.h.b16 %v356
    %v449 = vunpack.c.l.b16 %v357
    %v450 = vunpack.c.h.b16 %v357
    %v451 = vunpack.c.l.b16 %v358
    %v452 = vunpack.c.h.b16 %v358
    %v453 = vunpack.c.l.b16 %v359
    %v454 = vunpack.c.h.b16 %v359
    %v455 = vunpack.c.l.b16 %v360
    %v456 = vunpack.c.h.b16 %v360
    %v457 = vpack.c.b16 %v395, %v393
    %v458 = vpack.c.b16 %v396, %v394
    %v459 = vpack.c.b16 %v399, %v397
    %v460 = vpack.c.b16 %v400, %v398
    %v461 = vpack.c.b16 %v403, %v401
    %v462 = vpack.c.b16 %v404, %v402
    %v463 = vpack.c.b16 %v407, %v405
    %v464 = vpack.c.b16 %v408, %v406
    %v465 = vpack.c.b16 %v411, %v409
    %v466 = vpack.c.b16 %v412, %v410
    %v467 = vpack.c.b16 %v415, %v413
    %v468 = vpack.c.b16 %v416, %v414
    %v469 = vpack.c.b16 %v419, %v417
    %v470 = vpack.c.b16 %v420, %v418
    %v471 = vpack.c.b16 %v423, %v421
    %v472 = vpack.c.b16 %v424, %v422
    %v473 = vpack.c.b16 %v427, %v425
    %v474 = vpack.c.b16 %v428, %v426
    %v475 = vpack.c.b16 %v431, %v429
    %v476 = vpack.c.b16 %v432, %v430
    %v477 = vpack.c.b16 %v435, %v433
    %v478 = vpack.c.b16 %v436, %v434
    %v479 = vpack.c.b16 %v439, %v437
    %v480 = vpack.c.b16 %v440, %v438
    %v481 = vpack.c.b16 %v443, %v441
    %v482 = vpack.c.b16 %v444, %v442
    %v483 = vpack.c.b16 %v447, %v445
    %v484 = vpack.c.b16 %v448, %v446
    %v485 = vpack.c.b16 %v451, %v449
    %v486 = vpack.c.b16 %v452, %v450
    %v487 = vpack.c.b16 %v455, %v453
    %v488 = vpack.c.b16 %v456, %v454
    %521 = vmatprep.subr.bf16.mxu0 %v472
    %522 = vmatpush1.bf16.msra.mxu0 %v471
    %523 = vmatprep.subr.bf16.mxu0 %v470
    %524 = vmatpush1.bf16.msra.mxu0 %v469
    %525 = vmatprep.subr.bf16.mxu0 %v468
    %526 = vmatpush1.bf16.msra.mxu0 %v467
    %527 = vmatprep.subr.bf16.mxu0 %v466
    %528 = vmatpush1.bf16.msra.mxu0 %v465
    %529 = vmatprep.subr.bf16.mxu0 %v464
    %530 = vmatpush1.bf16.msra.mxu0 %v463
    %531 = vmatprep.subr.bf16.mxu0 %v462
    %532 = vmatpush1.bf16.msra.mxu0 %v461
    %533 = vmatprep.subr.bf16.mxu0 %v460
    %534 = vmatpush1.bf16.msra.mxu0 %v459
    %535 = vmatprep.subr.bf16.mxu0 %v458
    %536 = vmatpush1.bf16.msra.mxu0 %v457
    %537 = vmatprep.subr.bf16.mxu0 %v488
    %538 = vmatpush2.bf16.msra.mxu0 %v487
    %539 = vmatprep.subr.bf16.mxu0 %v486
    %540 = vmatpush2.bf16.msra.mxu0 %v485
    %541 = vmatprep.subr.bf16.mxu0 %v484
    %542 = vmatpush2.bf16.msra.mxu0 %v483
    %543 = vmatprep.subr.bf16.mxu0 %v482
    %544 = vmatpush2.bf16.msra.mxu0 %v481
    %545 = vmatprep.subr.bf16.mxu0 %v480
    %546 = vmatpush2.bf16.msra.mxu0 %v479
    %547 = vmatprep.subr.bf16.mxu0 %v478
    %548 = vmatpush2.bf16.msra.mxu0 %v477
    %549 = vmatprep.subr.bf16.mxu0 %v476
    %550 = vmatpush2.bf16.msra.mxu0 %v475
    %551 = vmatprep.subr.bf16.mxu0 %v474
    %552 = vmatpush2.bf16.msra.mxu0 %v473
    %553 = vmatprep.mubr.bf16.mxu0 %v328
    %554 = vmatmul.mubr.bf16.gmra.mxu0 %v327
    %v555 = vpop.f32.mrf.mxu0
    %v556 = vadd.f32 0.0, %v555
    %v557 = vpop.f32.mrf.mxu0
    %v558 = vadd.f32 0.0, %v557
    %v559 = vpop.f32.mrf.mxu0
    %v560 = vadd.f32 0.0, %v559
    %v561 = vpop.f32.mrf.mxu0
    %v562 = vadd.f32 0.0, %v561
    %563 = vdwg.mxu0
    %p564 = scmp.eq.s32.totalorder 0, 0
    // Predicated region
    $region34: #{tpu_custom_call.1} parent=1 // pred_check
      %p565 = pneg %p564
    $region35: #{tpu_custom_call.1} parent=1 // pred_check_branch
      %567 = sbr.rel (%p565) target = $region37
    $region36: #{tpu_custom_call.1} parent=1 // pred_region
      %v568 = vld [vmem:[%s4] sm:$0x3]
      %v570 = vlaneseq
      %v571 = vshrl.u32 %v570, 7
      %v572 = vsub.s32 0, %v571
      %v573 = vrot.slane %v568, %v572
      %v574 = vlaneseq
      %v575 = vshrl.u32 %v574, 7
      %v576 = vsub.s32 1, %v575
      %v577 = vrot.slane %v568, %v576
      %v580 = vadd.f32 %v556, %v573
      %v581 = vadd.f32 %v558, %v577
      %v582 = vadd.f32 %v560, %v573
      %v583 = vadd.f32 %v562, %v577
      %584 = vst [vmem:[#allocation8] sm:$0xff] %v580
      %585 = vst [vmem:[#allocation8 + $0x8] sm:$0xff] %v581
      %586 = vst [vmem:[#allocation8 + $0x10] sm:$0xff] %v582
      %587 = vst [vmem:[#allocation8 + $0x18] sm:$0xff] %v583
    $region37: #{tpu_custom_call.1} parent=1 // pred_fallthru
      _
    %p588 = scmp.ne.s32.totalorder 0, 0
    // Predicated region
    $region38: #{tpu_custom_call.1} parent=1 // pred_check
      %p589 = pneg %p588
    $region39: #{tpu_custom_call.1} parent=1 // pred_check_branch
      %591 = sbr.rel (%p589) target = $region41
    $region40: #{tpu_custom_call.1} parent=1 // pred_region
      %v592 = vld [vmem:[#allocation8] sm:$0xff]
      %v593 = vld [vmem:[#allocation8 + $0x8] sm:$0xff]
      %v594 = vld [vmem:[#allocation8 + $0x10] sm:$0xff]
      %v595 = vld [vmem:[#allocation8 + $0x18] sm:$0xff]
      %v596 = vadd.f32 %v592, %v556
      %v597 = vadd.f32 %v593, %v558
      %v598 = vadd.f32 %v594, %v560
      %v599 = vadd.f32 %v595, %v562
      %600 = vst [vmem:[#allocation8] sm:$0xff] %v596
      %601 = vst [vmem:[#allocation8 + $0x8] sm:$0xff] %v597
      %602 = vst [vmem:[#allocation8 + $0x10] sm:$0xff] %v598
      %603 = vst [vmem:[#allocation8 + $0x18] sm:$0xff] %v599
    $region41: #{tpu_custom_call.1} parent=1 // pred_fallthru
      _
    // Predicated region
    $region42: #{tpu_custom_call.1} parent=1 // pred_check
      _
    $region43: #{tpu_custom_call.1} parent=1 // pred_check_branch
      %605 = sbr.rel (0) target = $region45
    $region44: #{tpu_custom_call.1} parent=1 // pred_region
      %s607 = ssub.s32 512, 512
      %608 = vsyncadd [#allocation4], %s607
      %s609 = sshll.u32 [#allocation8], 4
      %s610 = int_to_ptr.vmem [resolvable:$true] %s609
      %615 = dma.vmem_to_hbm [thread:$0]  %s610, 512, %s5, [#allocation4], 256, 256, 16
    $region45: #{tpu_custom_call.1} parent=1 // pred_fallthru
      _
    // Predicated region
    $region46: #{tpu_custom_call.1} parent=1 // pred_check
      _
    $region47: #{tpu_custom_call.1} parent=1 // pred_check_branch
      %617 = sbr.rel (0) target = $region49
    $region48: #{tpu_custom_call.1} parent=1 // pred_region
      %618 = dma.done [#allocation4], 512
    $region49: #{tpu_custom_call.1} parent=1 // pred_fallthru
      _
    %619 = vsyncpa [#allocation3], 1
    %620 = vsyncpa [#allocation6], 1
    %621 = vsyncpa [#allocation4], 1

</llo_original>
